<compile_context>
chip_gen: v6e
topology: v6e:2x2x1
jax: 0.10.0
libtpu: 0.0.40
codegen_flags: <defaults>
</compile_context>

<pallas_src>
import jax
import jax.numpy as jnp
from jax import lax
from jax.experimental import pallas as pl
from jax.experimental.pallas import tpu as pltpu

LANE = 128


def _round_up(x, m):
    return ((x + m - 1) // m) * m


def _pair(v):
    return (v, v) if isinstance(v, int) else tuple(v)


def _im2col_gemm_kernel(x_ref, w_ref, b_ref, o_ref, acc_ref):
    # x_ref : (TM, TK)   im2col rows for TM output pixels, K-tile k
    # w_ref : (TK, TN)   (kh,kw,cin)-folded weights (or full (Kp,Cp) if resident)
    # b_ref : (1, TN)    f32 bias
    # o_ref : (TM, TN)
    # acc_ref: (TM, TN)  f32 accumulator scratch, persists across the k axis
    k = pl.program_id(2)

    @pl.when(k == 0)
    def _init():
        acc_ref[...] = jnp.zeros_like(acc_ref)

    acc_ref[...] += jnp.dot(x_ref[...], w_ref[...],
                            preferred_element_type=jnp.float32)

    @pl.when(k == pl.num_programs(2) - 1)
    def _finalize():
        o_ref[...] = (acc_ref[...] + b_ref[...]).astype(o_ref.dtype)


def meta_conv2d(x_nchw, weight_oihw, bias=None,
                stride=(1, 1), padding=(1, 1), dilation=(1, 1), groups=1,
                compute_dtype=None):
    """Pallas equivalent of F.conv2d(x, w, b, stride, padding, dilation, groups)."""
    assert groups == 1  # TODO(synk): grouped / depthwise convolution not implemented
    sh, sw = _pair(stride)
    ph, pw = _pair(padding)
    dh, dw = _pair(dilation)

    N, Cin, H, W = x_nchw.shape
    Cout, Cin_w, KH, KW = weight_oihw.shape
    assert Cin_w == Cin

    out_dtype = x_nchw.dtype
    compute_dtype = jnp.dtype(compute_dtype if compute_dtype is not None else out_dtype)
    sublane = 16 if compute_dtype.itemsize == 2 else 8

    Ho = (H + 2 * ph - dh * (KH - 1) - 1) // sh + 1
    Wo = (W + 2 * pw - dw * (KW - 1) - 1) // sw + 1

    # ---- layout-only glue (no FLOPs) -------------------------------------
    x_nhwc = jnp.transpose(x_nchw, (0, 2, 3, 1))
    x_pad = jnp.pad(x_nhwc, ((0, 0), (ph, ph), (pw, pw), (0, 0)))

    # im2col: fold (kh, kw, cin) into one contraction axis.  Stride/dilation
    # are applied here in plain JAX so the kernel never does strided gathers.
    cols = []
    for kh in range(KH):
        for kw in range(KW):
            h0 = kh * dh
            w0 = kw * dw
            cols.append(x_pad[:, h0:h0 + sh * (Ho - 1) + 1:sh,
                              w0:w0 + sw * (Wo - 1) + 1:sw, :])
    K = KH * KW * Cin
    M = N * Ho * Wo
    patches = jnp.concatenate(cols, axis=-1).reshape(M, K)

    # ---- tiling -----------------------------------------------------------
    TN = 256 if Cout > 128 else LANE          # fill the 256-wide MXU when possible
    Cp = _round_up(Cout, TN)
    n_j = Cp // TN

    if K <= 2048:                             # single K block
        TK = _round_up(K, sublane)
        Kp = TK
    else:                                     # K-tiled: caps per-step VMEM
        TK = 512                              # multiple of both 8 and 16
        Kp = _round_up(K, TK)
    nk = Kp // TK

    TM = 128
    for tm in (512, 256):                     # biggest TM that keeps >=8 grid steps
        if tm <= _round_up(M, LANE) and pl.cdiv(M, tm) * n_j * nk >= 8:
            TM = tm
            break
    Mp = _round_up(M, TM)
    n_i = Mp // TM

    # ---- operand packing / padding (zeros -> no effect on the sums) -------
    patches = jnp.pad(patches, ((0, Mp - M), (0, Kp - K))).astype(compute_dtype)
    w2d = jnp.transpose(weight_oihw, (2, 3, 1, 0)).reshape(K, Cout)
    w2d = jnp.pad(w2d, ((0, Kp - K), (0, Cp - Cout))).astype(compute_dtype)
    b1d = (jnp.zeros((Cout,), jnp.float32) if bias is None
           else bias.astype(jnp.float32))
    b2d = jnp.pad(b1d, (0, Cp - Cout)).reshape(1, Cp)

    # Whole weight is a single block: keep it VMEM-resident (constant block
    # index => HBM->VMEM DMA exactly once for the entire grid).
    w_resident = (nk == 1 and Cp == TN)
    if w_resident:
        w_spec = pl.BlockSpec((Kp, Cp), lambda i, j, k: (0, 0))
    else:
        w_spec = pl.BlockSpec((TK, TN), lambda i, j, k: (k, j))

    # VMEM limit computed from the actual working set (2 buffers per operand
    # + f32 accumulator), kept below v7x's 64 MiB physical VMEM.
    isz = compute_dtype.itemsize
    osz = jnp.dtype(out_dtype).itemsize
    w_block_bytes = (Kp * Cp if w_resident else TK * TN) * isz
    vmem_need = (2 * TM * TK * isz            # patches (double-buffered)
                 + 2 * w_block_bytes          # weights
                 + 2 * TN * 4                 # bias
                 + TM * TN * 4                # f32 accumulator scratch
                 + 2 * TM * TN * osz)         # output
    vmem_limit = int(min(max(2 * vmem_need, 32 * 1024 * 1024), 48 * 1024 * 1024))
    vmem_limit = int(max(vmem_limit, vmem_need + (4 << 20)))

    cost = pl.CostEstimate(
        flops=2 * Mp * Kp * Cp,
        transcendentals=0,
        bytes_accessed=(Mp * Kp + Kp * Cp) * isz + Cp * 4 + Mp * Cp * osz,
    )

    out2d = pl.pallas_call(
        _im2col_gemm_kernel,
        out_shape=jax.ShapeDtypeStruct((Mp, Cp), out_dtype),
        grid_spec=pltpu.PrefetchScalarGridSpec(
            num_scalar_prefetch=0,
            grid=(n_i, n_j, nk),
            in_specs=[
                pl.BlockSpec((TM, TK), lambda i, j, k: (i, k)),
                w_spec,
                pl.BlockSpec((1, TN), lambda i, j, k: (0, j)),
            ],
            out_specs=pl.BlockSpec((TM, TN), lambda i, j, k: (i, j)),
            scratch_shapes=[pltpu.VMEM((TM, TN), jnp.float32)],
        ),
        compiler_params=pltpu.CompilerParams(
            dimension_semantics=("parallel", "parallel", "arbitrary"),
            vmem_limit_bytes=vmem_limit,
            # Allow XLA to fuse the im2col slice/concat/pad producer directly
            # into the patches-operand DMA (avoids the KH*KW-x HBM round-trip).
            allow_input_fusion=[True, False, False],
        ),
        cost_estimate=cost,
    )(patches, w2d, b2d)

    # Strip padding, back to PyTorch NCHW convention.
    out_nhwc = out2d[:M, :Cout].reshape(N, Ho, Wo, Cout)
    return jnp.transpose(out_nhwc, (0, 3, 1, 2))


def _reference_conv2d(x, w, b, stride, padding, dilation):
    out = lax.conv_general_dilated(
        x, w,
        window_strides=stride,
        padding=[(padding[0], padding[0]), (padding[1], padding[1])],
        rhs_dilation=dilation,
        dimension_numbers=("NCHW", "OIHW", "NCHW"),
    )
    if b is not None:
        out = out + b.reshape(1, -1, 1, 1)
    return out


if __name__ == "__main__":
    key = jax.random.PRNGKey(0)
    kx, kw, kb = jax.random.split(key, 3)

    # MetaConv2d(in_channels=4, out_channels=8, kernel_size=3, stride=1,
    #            padding=1, bias=True) — deterministic synthetic parameters.
    N, Cin, H, W = 2, 4, 16, 16
    Cout, KH, KW = 8, 3, 3
    stride, padding, dilation, groups = (1, 1), (1, 1), (1, 1), 1

    x = jax.random.normal(kx, (N, Cin, H, W), dtype=jnp.float32)
    fan_in = Cin * KH * KW
    weight = jax.random.normal(kw, (Cout, Cin, KH, KW), dtype=jnp.float32) / jnp.sqrt(fan_in)
    bias = jax.random.normal(kb, (Cout,), dtype=jnp.float32) * 0.1

    ref = _reference_conv2d(x, weight, bias, stride, padding, dilation)

    # f32 path: exact F.conv2d semantics.
    out = jax.block_until_ready(
        meta_conv2d(x, weight, bias, stride, padding, dilation, groups))
    assert out.shape == ref.shape == (N, Cout, H, W)
    assert jnp.allclose(out, ref, atol=1e-4, rtol=1e-4), "f32 mismatch vs reference conv"

    # bf16-operand path (v6e/v7x MXU throughput option), f32 accumulation.
    out_bf16 = jax.block_until_ready(
        meta_conv2d(x, weight, bias, stride, padding, dilation, groups,
                    compute_dtype=jnp.bfloat16))
    assert jnp.allclose(out_bf16, ref, atol=5e-2, rtol=5e-2), "bf16 mismatch vs reference conv"

    # stride-2 / no-bias variant exercising the same kernel.
    kx2, kw2 = jax.random.split(kx)
    Cin2, Cout2 = 8, 16
    x2 = jax.random.normal(kx2, (N, Cin2, H, W), dtype=jnp.float32)
    w2 = jax.random.normal(kw2, (Cout2, Cin2, 3, 3), dtype=jnp.float32) / jnp.sqrt(Cin2 * 9)
    out2 = jax.block_until_ready(meta_conv2d(x2, w2, None, (2, 2), (1, 1), (1, 1), 1))
    ref2 = _reference_conv2d(x2, w2, None, (2, 2), (1, 1), (1, 1))
    assert out2.shape == ref2.shape
    assert jnp.allclose(out2, ref2, atol=1e-4, rtol=1e-4), "stride-2 mismatch vs reference conv"

    print("KERNEL_OK")
</pallas_src>

<mosaic_0001>
module attributes {stable_mosaic.version = 11 : i64} {
  func.func @_im2col_gemm_kernel(%arg0: i32, %arg1: i32, %arg2: i32, %arg3: memref<128x40xf32, #tpu.memory_space<vmem>>, %arg4: memref<40x128xf32, #tpu.memory_space<vmem>>, %arg5: memref<1x128xf32, #tpu.memory_space<vmem>>, %arg6: memref<128x128xf32, #tpu.memory_space<vmem>>, %arg7: memref<128x128xf32, #tpu.memory_space<vmem>>) attributes {dimension_semantics = [#tpu.dimension_semantics<parallel>, #tpu.dimension_semantics<parallel>, #tpu.dimension_semantics<arbitrary>], iteration_bounds = array<i64: 4, 1, 1>, scalar_prefetch = 0 : i64, scratch_operands = 1 : i64, tpu.core_type = #tpu.core_type<tc>, window_params = [{transform_indices = @transform_0, window_bounds = array<i64: 128, 40>}, {pipeline_mode = #tpu.pipeline_mode<synchronous>, transform_indices = @transform_1, window_bounds = array<i64: 40, 128>}, {transform_indices = @transform_2, window_bounds = array<i64: 1, 128>}, {transform_indices = @transform_3, window_bounds = array<i64: 128, 128>}]} {
    %c0_i32 = arith.constant 0 : i32
    %0 = arith.cmpi eq, %arg2, %c0_i32 : i32
    %1 = arith.extui %0 : i1 to i32
    %c0_i32_0 = arith.constant 0 : i32
    %2 = arith.cmpi ne, %1, %c0_i32_0 : i32
    scf.if %2 {
      %cst_10 = arith.constant 0.000000e+00 : f32
      %12 = vector.broadcast %cst_10 : f32 to vector<128x128xf32>
      %c0_11 = arith.constant 0 : index
      %c0_12 = arith.constant 0 : index
      %13 = vector.load %arg7[%c0_11, %c0_12] : memref<128x128xf32, #tpu.memory_space<vmem>>, vector<128x128xf32>
      tpu.vector_store %arg7[%c0_11, %c0_12], %12 {strides = array<i32>} : memref<128x128xf32, #tpu.memory_space<vmem>>, vector<128x128xf32>,
    } else {
    }
    %c0 = arith.constant 0 : index
    %c0_1 = arith.constant 0 : index
    %3 = vector.load %arg7[%c0, %c0_1] : memref<128x128xf32, #tpu.memory_space<vmem>>, vector<128x128xf32>
    %c0_2 = arith.constant 0 : index
    %c0_3 = arith.constant 0 : index
    %4 = vector.load %arg3[%c0_2, %c0_3] : memref<128x40xf32, #tpu.memory_space<vmem>>, vector<128x40xf32>
    %c0_4 = arith.constant 0 : index
    %c0_5 = arith.constant 0 : index
    %5 = vector.load %arg4[%c0_4, %c0_5] : memref<40x128xf32, #tpu.memory_space<vmem>>, vector<40x128xf32>
    %cst = arith.constant dense<0.000000e+00> : vector<128x128xf32>
    %6 = tpu.matmul %4, %5, %cst {dimension_numbers = #tpu.dot_dimension_numbers<[1], [0], [0], [1], [0, 0, 1, 1], [], []>} : vector<128x40xf32>, vector<40x128xf32>, vector<128x128xf32> -> vector<128x128xf32>
    %7 = arith.addf %3, %6 : vector<128x128xf32>
    %c0_6 = arith.constant 0 : index
    %c0_7 = arith.constant 0 : index
    %8 = vector.load %arg7[%c0_6, %c0_7] : memref<128x128xf32, #tpu.memory_space<vmem>>, vector<128x128xf32>
    tpu.vector_store %arg7[%c0_6, %c0_7], %7 {strides = array<i32>} : memref<128x128xf32, #tpu.memory_space<vmem>>, vector<128x128xf32>,
    %c0_i32_8 = arith.constant 0 : i32
    %9 = arith.cmpi eq, %arg2, %c0_i32_8 : i32
    %10 = arith.extui %9 : i1 to i32
    %c0_i32_9 = arith.constant 0 : i32
    %11 = arith.cmpi ne, %10, %c0_i32_9 : i32
    scf.if %11 {
      %c0_10 = arith.constant 0 : index
      %c0_11 = arith.constant 0 : index
      %12 = vector.load %arg7[%c0_10, %c0_11] : memref<128x128xf32, #tpu.memory_space<vmem>>, vector<128x128xf32>
      %c0_12 = arith.constant 0 : index
      %c0_13 = arith.constant 0 : index
      %13 = vector.load %arg5[%c0_12, %c0_13] : memref<1x128xf32, #tpu.memory_space<vmem>>, vector<1x128xf32>
      %14 = vector.broadcast %13 : vector<1x128xf32> to vector<128x128xf32>
      %15 = arith.addf %12, %14 : vector<128x128xf32>
      %c0_14 = arith.constant 0 : index
      %c0_15 = arith.constant 0 : index
      %16 = vector.load %arg6[%c0_14, %c0_15] : memref<128x128xf32, #tpu.memory_space<vmem>>, vector<128x128xf32>
      tpu.vector_store %arg6[%c0_14, %c0_15], %15 {strides = array<i32>} : memref<128x128xf32, #tpu.memory_space<vmem>>, vector<128x128xf32>,
    } else {
    }
    return
  }
  func.func @transform_0(%arg0: i32, %arg1: i32, %arg2: i32) -> (i32, i32) {
    %c0_i32 = arith.constant 0 : i32
    return %arg0, %arg2 : i32, i32
  }
  func.func @transform_1(%arg0: i32, %arg1: i32, %arg2: i32) -> (i32, i32) {
    %c0_i32 = arith.constant 0 : i32
    %c0_i32_0 = arith.constant 0 : i32
    %c0_i32_1 = arith.constant 0 : i32
    return %c0_i32, %c0_i32_0 : i32, i32
  }
  func.func @transform_2(%arg0: i32, %arg1: i32, %arg2: i32) -> (i32, i32) {
    %c0_i32 = arith.constant 0 : i32
    %c0_i32_0 = arith.constant 0 : i32
    return %c0_i32, %arg1 : i32, i32
  }
  func.func @transform_3(%arg0: i32, %arg1: i32, %arg2: i32) -> (i32, i32) {
    %c0_i32 = arith.constant 0 : i32
    return %arg0, %arg1 : i32, i32
  }
}

</mosaic_0001>

<llo_original>
// kernel: tpu_custom_call.1
$region0: #{tpu_custom_call.1}
  #allocation0 [shape = 'u32[]', space=smem, size = 0x4, offset = 0x4, fixed_abs, tag = 'smem constant byte address 0x4 - core index']
  #allocation1 [shape = 'u32[144,128]{1,0:T(1,128)}', space=vmem, size = 0x12000, scoped, tag = 'internal scratch']
  #allocation2 [shape = 'f32[128,128]{1,0:T(8,128)}', space=vmem, size = 0x10000, scoped, tag = 'scratch operand']
  %s0 = inlined_call_operand.vmem [shape: f32[512,40], index: 0, kind: input, shape index: {}]
  %s1 = inlined_call_operand.vmem [shape: f32[40,128], index: 1, kind: input, shape index: {}]
  %s2 = inlined_call_operand.vmem [shape: f32[1,128], index: 2, kind: input, shape index: {}]
  %s3 = inlined_call_operand.hbm [shape: f32[512,128], index: 3, kind: output, shape index: {}]
  %s4 = sld [smem:[#allocation0]]
  $region53: #{tpu_custom_call.1} parent=0
    _
  %s6 = ssub.s32 1, %s4
  %s7 = scalar_select 0, %s6, %s4
  $region1: #{tpu_custom_call.1} parent=0
    #allocation3 [shape = 'u8[131072]{0}', space=vmem, size = 0x20000, scoped, tag = 'output window, operand 0']
    #allocation4 [shape = 's32[2]{0}', space=sflag, size = 0x8, scoped, tag = 'scoped memory for tpu_custom_call.1']
    %8 = vsyncpa [#allocation4], 0
    %s9 = scalar_lea.sflag [#allocation4], 1
    %10 = vsyncpa %s9, 0
    loop: start=0, step=1, limit=6
    $region2: #{tpu_custom_call.1} parent=1 // loop_pre_header
      _
    $region3: #{tpu_custom_call.1} parent=1 // loop_header
      %s12 = sphi 0, %s16
      %p13 = scmp.ge.s32.totalorder %s12, 6
      %s19 = sphi 0, %s38
      %s20 = sphi 0, %s34
      %s21 = sphi 0, %s30
      %s22 = sphi 0, %s19
      %s23 = sphi 0, %s20
      %s24 = sphi 0, %s21
      %s25 = sphi 0, %s22
      %s26 = sphi 0, %s23
      %s27 = sphi 0, %s24
      %s43 = sphi 0, %s45
      %s46 = sphi 0, %s43
      %s47 = sphi 0, %s46
      %s63 = sphi 0, %s47
      %s67 = sphi 0, %s67
      %s69 = sphi 0, %s67
      %s70 = sphi 0, %s69
      %s84 = sphi 0, %s70
      %s90 = sphi 0, %s92
      %s93 = sphi 0, %s90
      %s94 = sphi 0, %s93
      %s110 = sphi 0, %s94
      %s118 = sphi 0, %s120
      %s121 = sphi 0, %s118
      %s122 = sphi 0, %s121
      %s138 = sphi 0, %s122
    $region4: #{tpu_custom_call.1} parent=1 // loop_header_branch
      %15 = sbr.rel (%p13) target = $region8
    $region5: #{tpu_custom_call.1} parent=1 // loop_body
      %s17 = ssub.s32 %s12, 1
      %s18 = ssub.s32 %s12, 2
      %s28 = sadd.s32 1, %s21
      %p29 = scmp.ge.s32.totalorder %s28, 1
      %s30 = scalar_select %p29, 0, %s28
      %s31 = sadd.s32 1, %s20
      %s32 = scalar_select %p29, %s31, %s20
      %p33 = scmp.ge.s32.totalorder %s32, 1
      %s34 = scalar_select %p33, 0, %s32
      %s35 = sadd.s32 1, %s19
      %s36 = scalar_select %p33, %s35, %s19
      %p37 = scmp.ge.s32.totalorder %s36, 4
      %s38 = scalar_select %p37, 0, %s36
      %s39 = ssub.s32 %s19, %s38
      %s40 = ssub.s32 %s21, %s30
      %s41 = sor.u32 %s39, %s40
      %p42 = scmp.eq.s32.totalorder %s41, 0
      %s44 = sadd.s32 %s43, 1
      %s45 = scalar_select %p42, %s43, %s44
      %p48 = pneg %p42
      %p49 = scmp.eq.s32.totalorder %s12, 3
      %p50 = por %p48, %p49
      %p51 = scmp.ne.s32.totalorder %s43, %s46
      %p52 = scmp.eq.s32.totalorder %s12, 0
      %p53 = por %p51, %p52
      %p54 = scmp.ne.s32.totalorder %s43, %s46
      %p55 = scmp.eq.s32.totalorder %s17, 3
      %p56 = por %p54, %p55
      %p57 = scmp.ne.s32.totalorder %s46, %s47
      %p58 = scmp.eq.s32.totalorder %s17, 0
      %p59 = por %p57, %p58
      %p60 = scmp.ne.s32.totalorder %s46, %s47
      %p61 = scmp.eq.s32.totalorder %s18, 3
      %p62 = por %p60, %p61
      %p64 = scmp.ne.s32.totalorder %s47, %s63
      %p65 = scmp.eq.s32.totalorder %s18, 0
      %p66 = por %p64, %p65
      %s68 = sadd.s32 %s67, 1
      %p71 = scmp.eq.s32.totalorder %s12, 3
      %p72 = scmp.ne.s32.totalorder %s67, %s69
      %p73 = scmp.eq.s32.totalorder %s12, 0
      %p74 = por %p72, %p73
      %p75 = scmp.ne.s32.totalorder %s67, %s69
      %p76 = scmp.eq.s32.totalorder %s17, 3
      %p77 = por %p75, %p76
      %p78 = scmp.ne.s32.totalorder %s69, %s70
      %p79 = scmp.eq.s32.totalorder %s17, 0
      %p80 = por %p78, %p79
      %p81 = scmp.ne.s32.totalorder %s69, %s70
      %p82 = scmp.eq.s32.totalorder %s18, 3
      %p83 = por %p81, %p82
      %p85 = scmp.ne.s32.totalorder %s70, %s84
      %p86 = scmp.eq.s32.totalorder %s18, 0
      %p87 = por %p85, %p86
      %s88 = ssub.s32 %s20, %s34
      %p89 = scmp.eq.s32.totalorder %s88, 0
      %s91 = sadd.s32 %s90, 1
      %s92 = scalar_select %p89, %s90, %s91
      %p95 = pneg %p89
      %p96 = scmp.eq.s32.totalorder %s12, 3
      %p97 = por %p95, %p96
      %p98 = scmp.ne.s32.totalorder %s90, %s93
      %p99 = scmp.eq.s32.totalorder %s12, 0
      %p100 = por %p98, %p99
      %p101 = scmp.ne.s32.totalorder %s90, %s93
      %p102 = scmp.eq.s32.totalorder %s17, 3
      %p103 = por %p101, %p102
      %p104 = scmp.ne.s32.totalorder %s93, %s94
      %p105 = scmp.eq.s32.totalorder %s17, 0
      %p106 = por %p104, %p105
      %p107 = scmp.ne.s32.totalorder %s93, %s94
      %p108 = scmp.eq.s32.totalorder %s18, 3
      %p109 = por %p107, %p108
      %p111 = scmp.ne.s32.totalorder %s94, %s110
      %p112 = scmp.eq.s32.totalorder %s18, 0
      %p113 = por %p111, %p112
      %s114 = ssub.s32 %s19, %s38
      %s115 = ssub.s32 %s20, %s34
      %s116 = sor.u32 %s114, %s115
      %p117 = scmp.eq.s32.totalorder %s116, 0
      %s119 = sadd.s32 %s118, 1
      %s120 = scalar_select %p117, %s118, %s119
      %p123 = pneg %p117
      %p124 = scmp.eq.s32.totalorder %s12, 3
      %p125 = por %p123, %p124
      %p126 = scmp.ne.s32.totalorder %s118, %s121
      %p127 = scmp.eq.s32.totalorder %s12, 0
      %p128 = por %p126, %p127
      %p129 = scmp.ne.s32.totalorder %s118, %s121
      %p130 = scmp.eq.s32.totalorder %s17, 3
      %p131 = por %p129, %p130
      %p132 = scmp.ne.s32.totalorder %s121, %s122
      %p133 = scmp.eq.s32.totalorder %s17, 0
      %p134 = por %p132, %p133
      %p135 = scmp.ne.s32.totalorder %s121, %s122
      %p136 = scmp.eq.s32.totalorder %s18, 3
      %p137 = por %p135, %p136
      %p139 = scmp.ne.s32.totalorder %s122, %s138
      %p140 = scmp.eq.s32.totalorder %s18, 0
      %p141 = por %p139, %p140
      %p142 = scmp.le.s32.totalorder 1, %s12
      %p143 = scmp.lt.s32.totalorder %s12, 5
      %p144 = pnand %p142, %p143
      %p145 = pneg %p144
      // Predicated region
      $region9: #{tpu_custom_call.1} parent=5 // pred_check
        _
      $region10: #{tpu_custom_call.1} parent=5 // pred_check_branch
        %147 = sbr.rel (%p144) target = $region12
      $region11: #{tpu_custom_call.1} parent=5 // pred_region
        %s148 = ssub.s32 %s12, 1
        // Predicated region
        $region13: #{tpu_custom_call.1} parent=11 // pred_check
          %p149 = pneg %p80
        $region14: #{tpu_custom_call.1} parent=11 // pred_check_branch
          %151 = sbr.rel (%p149) target = $region16
        $region15: #{tpu_custom_call.1} parent=11 // pred_region
          _
        $region16: #{tpu_custom_call.1} parent=11 // pred_fallthru
          _
        // Predicated region
        $region17: #{tpu_custom_call.1} parent=11 // pred_check
          %p152 = pneg %p106
        $region18: #{tpu_custom_call.1} parent=11 // pred_check_branch
          %154 = sbr.rel (%p152) target = $region20
        $region19: #{tpu_custom_call.1} parent=11 // pred_region
          %p155 = scmp.lt.s32.totalorder %s23, 0
          %s156 = scalar_select %p155, %s23, 0
          %s157 = scalar_lea.vmem %s2, %s156
        $region20: #{tpu_custom_call.1} parent=11 // pred_fallthru
          _
      $region12: #{tpu_custom_call.1} parent=5 // pred_fallthru
        _
      %p158 = scmp.lt.s32.totalorder %s12, 4
      // Predicated region
      $region21: #{tpu_custom_call.1} parent=5 // pred_check
        %p159 = pneg %p158
      $region22: #{tpu_custom_call.1} parent=5 // pred_check_branch
        %161 = sbr.rel (%p159) target = $region24
      $region23: #{tpu_custom_call.1} parent=5 // pred_region
        // Predicated region
        $region25: #{tpu_custom_call.1} parent=23 // pred_check
          %p162 = pneg %p53
        $region26: #{tpu_custom_call.1} parent=23 // pred_check_branch
          %164 = sbr.rel (%p162) target = $region28
        $region27: #{tpu_custom_call.1} parent=23 // pred_region
          %s165 = smul.u32 16, %s19
          %p166 = scmp.lt.s32.totalorder %s165, 63
          %s167 = scalar_select %p166, %s165, 63
          %p168 = scmp.lt.s32.totalorder %s21, 0
          %s169 = scalar_select %p168, %s21, 0
          %s170 = sadd.s32 %s169, %s167
          %s171 = smul.addr %s170, 8
          %s172 = scalar_lea.vmem %s0, %s171
          %s173 = smul.u32 16, %s19
        $region28: #{tpu_custom_call.1} parent=23 // pred_fallthru
          _
      $region24: #{tpu_custom_call.1} parent=5 // pred_fallthru
        _
      %p174 = scmp.le.s32.totalorder 1, %s12
      %p175 = scmp.lt.s32.totalorder %s12, 5
      %p176 = pnand %p174, %p175
      %p177 = pneg %p176
      // Predicated region
      $region29: #{tpu_custom_call.1} parent=5 // pred_check
        _
      $region30: #{tpu_custom_call.1} parent=5 // pred_check_branch
        %179 = sbr.rel (%p176) target = $region32
      $region31: #{tpu_custom_call.1} parent=5 // pred_region
        %s180 = ssub.s32 %s12, 1
        %s181 = smul.u32 16, %s22
        %p182 = scmp.lt.s32.totalorder %s181, 63
        %s183 = scalar_select %p182, %s181, 63
        %p184 = scmp.lt.s32.totalorder %s24, 0
        %s185 = scalar_select %p184, %s24, 0
        %s186 = sadd.s32 %s185, %s183
        %s187 = smul.addr %s186, 8
        %s188 = scalar_lea.vmem %s0, %s187
        %p189 = pneg %p59
        %p190 = pneg %p56
        %p191 = pneg %p80
        %p192 = pneg %p77
        %p193 = scmp.lt.s32.totalorder %s23, 0
        %s194 = scalar_select %p193, %s23, 0
        %s195 = scalar_lea.vmem %s2, %s194
        %p196 = pneg %p106
        %p197 = pneg %p103
        %p198 = pneg %p134
        %p199 = pneg %p131
        %s200 = sand.u32 %s121, 1
        %s201 = scalar_lea.sflag [#allocation4], %s200
        %s202 = sand.u32 %s121, 1
        %s203 = smul.addr %s202, 128
        %s204 = scalar_lea.vmem [#allocation3], %s203
        %s205 = smul.u32 16, %s22
        %p206 = scmp.lt.s32.totalorder %s205, 63
        %s207 = scalar_select %p206, %s205, 63
        %p208 = scmp.lt.s32.totalorder %s24, 0
        %s209 = scalar_select %p208, %s24, 0
        %s210 = sadd.s32 %s209, %s207
        %s211 = smul.addr %s210, 8
        %s212 = scalar_lea.vmem %s0, %s211
        %s213 = smul.u32 16, %s22
        %p214 = scmp.lt.s32.totalorder %s23, 0
        %s215 = scalar_select %p214, %s23, 0
        %s216 = scalar_lea.vmem %s2, %s215
        %s217 = smul.u32 16, %s22
        %p218 = scmp.eq.s32.totalorder %s24, 0
        // Predicated region
        $region33: #{tpu_custom_call.1} parent=31 // pred_check
          %p219 = pneg %p218
        $region34: #{tpu_custom_call.1} parent=31 // pred_check_branch
          %221 = sbr.rel (%p219) target = $region36
        $region35: #{tpu_custom_call.1} parent=31 // pred_region
          %222 = vst [vmem:[#allocation2] sm:$0xff] 0.0
          %223 = vst [vmem:[#allocation2 + $0x8] sm:$0xff] 0.0
          %224 = vst [vmem:[#allocation2 + $0x10] sm:$0xff] 0.0
          %225 = vst [vmem:[#allocation2 + $0x18] sm:$0xff] 0.0
          %226 = vst [vmem:[#allocation2 + $0x20] sm:$0xff] 0.0
          %227 = vst [vmem:[#allocation2 + $0x28] sm:$0xff] 0.0
          %228 = vst [vmem:[#allocation2 + $0x30] sm:$0xff] 0.0
          %229 = vst [vmem:[#allocation2 + $0x38] sm:$0xff] 0.0
          %230 = vst [vmem:[#allocation2 + $0x40] sm:$0xff] 0.0
          %231 = vst [vmem:[#allocation2 + $0x48] sm:$0xff] 0.0
          %232 = vst [vmem:[#allocation2 + $0x50] sm:$0xff] 0.0
          %233 = vst [vmem:[#allocation2 + $0x58] sm:$0xff] 0.0
          %234 = vst [vmem:[#allocation2 + $0x60] sm:$0xff] 0.0
          %235 = vst [vmem:[#allocation2 + $0x68] sm:$0xff] 0.0
          %236 = vst [vmem:[#allocation2 + $0x70] sm:$0xff] 0.0
          %237 = vst [vmem:[#allocation2 + $0x78] sm:$0xff] 0.0
        $region36: #{tpu_custom_call.1} parent=31 // pred_fallthru
          _
        %v238 = vld [vmem:[#allocation2] sm:$0xff]
        %v239 = vld [vmem:[#allocation2 + $0x8] sm:$0xff]
        %v240 = vld [vmem:[#allocation2 + $0x10] sm:$0xff]
        %v241 = vld [vmem:[#allocation2 + $0x18] sm:$0xff]
        %v242 = vld [vmem:[#allocation2 + $0x20] sm:$0xff]
        %v243 = vld [vmem:[#allocation2 + $0x28] sm:$0xff]
        %v244 = vld [vmem:[#allocation2 + $0x30] sm:$0xff]
        %v245 = vld [vmem:[#allocation2 + $0x38] sm:$0xff]
        %v246 = vld [vmem:[#allocation2 + $0x40] sm:$0xff]
        %v247 = vld [vmem:[#allocation2 + $0x48] sm:$0xff]
        %v248 = vld [vmem:[#allocation2 + $0x50] sm:$0xff]
        %v249 = vld [vmem:[#allocation2 + $0x58] sm:$0xff]
        %v250 = vld [vmem:[#allocation2 + $0x60] sm:$0xff]
        %v251 = vld [vmem:[#allocation2 + $0x68] sm:$0xff]
        %v252 = vld [vmem:[#allocation2 + $0x70] sm:$0xff]
        %v253 = vld [vmem:[#allocation2 + $0x78] sm:$0xff]
        %v254 = vld [vmem:[%s212] sm:$0xff]
        %v255 = vld [vmem:[%s212 + $0x8] sm:$0xff]
        %v256 = vld [vmem:[%s212 + $0x10] sm:$0xff]
        %v257 = vld [vmem:[%s212 + $0x18] sm:$0xff]
        %v258 = vld [vmem:[%s212 + $0x20] sm:$0xff]
        %v259 = vld [vmem:[%s212 + $0x28] sm:$0xff]
        %v260 = vld [vmem:[%s212 + $0x30] sm:$0xff]
        %v261 = vld [vmem:[%s212 + $0x38] sm:$0xff]
        %v262 = vld [vmem:[%s212 + $0x40] sm:$0xff]
        %v263 = vld [vmem:[%s212 + $0x48] sm:$0xff]
        %v264 = vld [vmem:[%s212 + $0x50] sm:$0xff]
        %v265 = vld [vmem:[%s212 + $0x58] sm:$0xff]
        %v266 = vld [vmem:[%s212 + $0x60] sm:$0xff]
        %v267 = vld [vmem:[%s212 + $0x68] sm:$0xff]
        %v268 = vld [vmem:[%s212 + $0x70] sm:$0xff]
        %v269 = vld [vmem:[%s212 + $0x78] sm:$0xff]
        %v270 = vld [vmem:[%s1] sm:$0xff]
        %v271 = vld [vmem:[%s1 + $0x8] sm:$0xff]
        %v272 = vld [vmem:[%s1 + $0x10] sm:$0xff]
        %v273 = vld [vmem:[%s1 + $0x18] sm:$0xff]
        %v274 = vld [vmem:[%s1 + $0x20] sm:$0xff]
        %vm275 = vcmask 326656
        %v277 = vsel %vm275, %v254, 0
        %v280 = vsel %vm275, %v255, 0
        %v283 = vsel %vm275, %v256, 0
        %v286 = vsel %vm275, %v257, 0
        %v289 = vsel %vm275, %v258, 0
        %v292 = vsel %vm275, %v259, 0
        %v295 = vsel %vm275, %v260, 0
        %v298 = vsel %vm275, %v261, 0
        %v301 = vsel %vm275, %v262, 0
        %v304 = vsel %vm275, %v263, 0
        %v307 = vsel %vm275, %v264, 0
        %v310 = vsel %vm275, %v265, 0
        %v313 = vsel %vm275, %v266, 0
        %v316 = vsel %vm275, %v267, 0
        %v319 = vsel %vm275, %v268, 0
        %v322 = vsel %vm275, %v269, 0
        %324 = vmatprep.subr.mxu0 0.0
        %325 = vmatpush1.msra.mxu0 0.0
        %326 = vmatprep.subr.mxu0 0.0
        %327 = vmatpush1.msra.mxu0 0.0
        %328 = vmatprep.subr.mxu0 0.0
        %329 = vmatpush1.msra.mxu0 0.0
        %330 = vmatprep.subr.mxu0 0.0
        %331 = vmatpush1.msra.mxu0 0.0
        %332 = vmatprep.subr.mxu0 0.0
        %333 = vmatpush1.msra.mxu0 0.0
        %334 = vmatprep.subr.mxu0 0.0
        %335 = vmatpush1.msra.mxu0 0.0
        %336 = vmatprep.subr.mxu0 0.0
        %337 = vmatpush1.msra.mxu0 0.0
        %338 = vmatprep.subr.mxu0 0.0
        %339 = vmatpush1.msra.mxu0 0.0
        %340 = vmatprep.subr.mxu0 0.0
        %341 = vmatpush1.msra.mxu0 0.0
        %342 = vmatprep.subr.mxu0 0.0
        %343 = vmatpush1.msra.mxu0 0.0
        %344 = vmatprep.subr.mxu0 0.0
        %345 = vmatpush1.msra.mxu0 0.0
        %346 = vmatprep.subr.mxu0 0.0
        %347 = vmatpush1.msra.mxu0 %v274
        %348 = vmatprep.subr.mxu0 0.0
        %349 = vmatpush1.msra.mxu0 %v273
        %350 = vmatprep.subr.mxu0 0.0
        %351 = vmatpush1.msra.mxu0 %v272
        %352 = vmatprep.subr.mxu0 0.0
        %353 = vmatpush1.msra.mxu0 %v271
        %354 = vmatprep.subr.mxu0 0.0
        %355 = vmatpush1.msra.mxu0 %v270
        %356 = vmatprep.subr.mxu0 0.0
        %357 = vmatpush2.msra.mxu0 0.0
        %358 = vmatprep.subr.mxu0 0.0
        %359 = vmatpush2.msra.mxu0 0.0
        %360 = vmatprep.subr.mxu0 0.0
        %361 = vmatpush2.msra.mxu0 0.0
        %362 = vmatprep.subr.mxu0 0.0
        %363 = vmatpush2.msra.mxu0 0.0
        %364 = vmatprep.subr.mxu0 0.0
        %365 = vmatpush2.msra.mxu0 0.0
        %366 = vmatprep.subr.mxu0 0.0
        %367 = vmatpush2.msra.mxu0 0.0
        %368 = vmatprep.subr.mxu0 0.0
        %369 = vmatpush2.msra.mxu0 0.0
        %370 = vmatprep.subr.mxu0 0.0
        %371 = vmatpush2.msra.mxu0 0.0
        %372 = vmatprep.subr.mxu0 0.0
        %373 = vmatpush2.msra.mxu0 0.0
        %374 = vmatprep.subr.mxu0 0.0
        %375 = vmatpush2.msra.mxu0 0.0
        %376 = vmatprep.subr.mxu0 0.0
        %377 = vmatpush2.msra.mxu0 0.0
        %378 = vmatprep.subr.mxu0 0.0
        %379 = vmatpush2.msra.mxu0 0.0
        %380 = vmatprep.subr.mxu0 0.0
        %381 = vmatpush2.msra.mxu0 0.0
        %382 = vmatprep.subr.mxu0 0.0
        %383 = vmatpush2.msra.mxu0 0.0
        %384 = vmatprep.subr.mxu0 0.0
        %385 = vmatpush2.msra.mxu0 0.0
        %386 = vmatprep.subr.mxu0 0.0
        %387 = vmatpush2.msra.mxu0 0.0
        %388 = vmatprep.mubr.f32.mxu0 0.0
        %389 = vmatmul.mubr.f32.gmra.mxu0 %v277
        %v390 = vpop.f32.mrf.mxu0
        %v391 = vadd.f32 0.0, %v390
        %v392 = vpop.f32.mrf.mxu0
        %393 = vmatprep.mubr.f32.mxu0 0.0
        %394 = vmatmul.mubr.f32.gmra.mxu0 %v280
        %v395 = vpop.f32.mrf.mxu0
        %v396 = vadd.f32 0.0, %v395
        %v397 = vpop.f32.mrf.mxu0
        %398 = vmatprep.mubr.f32.mxu0 0.0
        %399 = vmatmul.mubr.f32.gmra.mxu0 %v283
        %v400 = vpop.f32.mrf.mxu0
        %v401 = vadd.f32 0.0, %v400
        %v402 = vpop.f32.mrf.mxu0
        %403 = vmatprep.mubr.f32.mxu0 0.0
        %404 = vmatmul.mubr.f32.gmra.mxu0 %v286
        %v405 = vpop.f32.mrf.mxu0
        %v406 = vadd.f32 0.0, %v405
        %v407 = vpop.f32.mrf.mxu0
        %408 = vmatprep.mubr.f32.mxu0 0.0
        %409 = vmatmul.mubr.f32.gmra.mxu0 %v289
        %v410 = vpop.f32.mrf.mxu0
        %v411 = vadd.f32 0.0, %v410
        %v412 = vpop.f32.mrf.mxu0
        %413 = vmatprep.mubr.f32.mxu0 0.0
        %414 = vmatmul.mubr.f32.gmra.mxu0 %v292
        %v415 = vpop.f32.mrf.mxu0
        %v416 = vadd.f32 0.0, %v415
        %v417 = vpop.f32.mrf.mxu0
        %418 = vmatprep.mubr.f32.mxu0 0.0
        %419 = vmatmul.mubr.f32.gmra.mxu0 %v295
        %v420 = vpop.f32.mrf.mxu0
        %v421 = vadd.f32 0.0, %v420
        %v422 = vpop.f32.mrf.mxu0
        %423 = vmatprep.mubr.f32.mxu0 0.0
        %424 = vmatmul.mubr.f32.gmra.mxu0 %v298
        %v425 = vpop.f32.mrf.mxu0
        %v426 = vadd.f32 0.0, %v425
        %v427 = vpop.f32.mrf.mxu0
        %428 = vmatprep.mubr.f32.mxu0 0.0
        %429 = vmatmul.mubr.f32.gmra.mxu0 %v301
        %v430 = vpop.f32.mrf.mxu0
        %v431 = vadd.f32 0.0, %v430
        %v432 = vpop.f32.mrf.mxu0
        %433 = vmatprep.mubr.f32.mxu0 0.0
        %434 = vmatmul.mubr.f32.gmra.mxu0 %v304
        %v435 = vpop.f32.mrf.mxu0
        %v436 = vadd.f32 0.0, %v435
        %v437 = vpop.f32.mrf.mxu0
        %438 = vmatprep.mubr.f32.mxu0 0.0
        %439 = vmatmul.mubr.f32.gmra.mxu0 %v307
        %v440 = vpop.f32.mrf.mxu0
        %v441 = vadd.f32 0.0, %v440
        %v442 = vpop.f32.mrf.mxu0
        %443 = vmatprep.mubr.f32.mxu0 0.0
        %444 = vmatmul.mubr.f32.gmra.mxu0 %v310
        %v445 = vpop.f32.mrf.mxu0
        %v446 = vadd.f32 0.0, %v445
        %v447 = vpop.f32.mrf.mxu0
        %448 = vmatprep.mubr.f32.mxu0 0.0
        %449 = vmatmul.mubr.f32.gmra.mxu0 %v313
        %v450 = vpop.f32.mrf.mxu0
        %v451 = vadd.f32 0.0, %v450
        %v452 = vpop.f32.mrf.mxu0
        %453 = vmatprep.mubr.f32.mxu0 0.0
        %454 = vmatmul.mubr.f32.gmra.mxu0 %v316
        %v455 = vpop.f32.mrf.mxu0
        %v456 = vadd.f32 0.0, %v455
        %v457 = vpop.f32.mrf.mxu0
        %458 = vmatprep.mubr.f32.mxu0 0.0
        %459 = vmatmul.mubr.f32.gmra.mxu0 %v319
        %v460 = vpop.f32.mrf.mxu0
        %v461 = vadd.f32 0.0, %v460
        %v462 = vpop.f32.mrf.mxu0
        %463 = vmatprep.mubr.f32.mxu0 0.0
        %464 = vmatmul.mubr.f32.gmra.mxu0 %v322
        %v465 = vpop.f32.mrf.mxu0
        %v466 = vadd.f32 0.0, %v465
        %v467 = vpop.f32.mrf.mxu0
        %468 = vdwg.mxu0
        %v469 = vadd.f32 %v238, %v391
        %v470 = vadd.f32 %v239, %v396
        %v471 = vadd.f32 %v240, %v401
        %v472 = vadd.f32 %v241, %v406
        %v473 = vadd.f32 %v242, %v411
        %v474 = vadd.f32 %v243, %v416
        %v475 = vadd.f32 %v244, %v421
        %v476 = vadd.f32 %v245, %v426
        %v477 = vadd.f32 %v246, %v431
        %v478 = vadd.f32 %v247, %v436
        %v479 = vadd.f32 %v248, %v441
        %v480 = vadd.f32 %v249, %v446
        %v481 = vadd.f32 %v250, %v451
        %v482 = vadd.f32 %v251, %v456
        %v483 = vadd.f32 %v252, %v461
        %v484 = vadd.f32 %v253, %v466
        %485 = vst [vmem:[#allocation2] sm:$0xff] %v469
        %486 = vst [vmem:[#allocation2 + $0x8] sm:$0xff] %v470
        %487 = vst [vmem:[#allocation2 + $0x10] sm:$0xff] %v471
        %488 = vst [vmem:[#allocation2 + $0x18] sm:$0xff] %v472
        %489 = vst [vmem:[#allocation2 + $0x20] sm:$0xff] %v473
        %490 = vst [vmem:[#allocation2 + $0x28] sm:$0xff] %v474
        %491 = vst [vmem:[#allocation2 + $0x30] sm:$0xff] %v475
        %492 = vst [vmem:[#allocation2 + $0x38] sm:$0xff] %v476
        %493 = vst [vmem:[#allocation2 + $0x40] sm:$0xff] %v477
        %494 = vst [vmem:[#allocation2 + $0x48] sm:$0xff] %v478
        %495 = vst [vmem:[#allocation2 + $0x50] sm:$0xff] %v479
        %496 = vst [vmem:[#allocation2 + $0x58] sm:$0xff] %v480
        %497 = vst [vmem:[#allocation2 + $0x60] sm:$0xff] %v481
        %498 = vst [vmem:[#allocation2 + $0x68] sm:$0xff] %v482
        %499 = vst [vmem:[#allocation2 + $0x70] sm:$0xff] %v483
        %500 = vst [vmem:[#allocation2 + $0x78] sm:$0xff] %v484
        // Predicated region
        $region37: #{tpu_custom_call.1} parent=31 // pred_check
          %p501 = pneg %p218
        $region38: #{tpu_custom_call.1} parent=31 // pred_check_branch
          %503 = sbr.rel (%p501) target = $region40
        $region39: #{tpu_custom_call.1} parent=31 // pred_region
          %v504 = vld [vmem:[#allocation2] sm:$0xff]
          %v505 = vld [vmem:[#allocation2 + $0x8] sm:$0xff]
          %v506 = vld [vmem:[#allocation2 + $0x10] sm:$0xff]
          %v507 = vld [vmem:[#allocation2 + $0x18] sm:$0xff]
          %v508 = vld [vmem:[#allocation2 + $0x20] sm:$0xff]
          %v509 = vld [vmem:[#allocation2 + $0x28] sm:$0xff]
          %v510 = vld [vmem:[#allocation2 + $0x30] sm:$0xff]
          %v511 = vld [vmem:[#allocation2 + $0x38] sm:$0xff]
          %v512 = vld [vmem:[#allocation2 + $0x40] sm:$0xff]
          %v513 = vld [vmem:[#allocation2 + $0x48] sm:$0xff]
          %v514 = vld [vmem:[#allocation2 + $0x50] sm:$0xff]
          %v515 = vld [vmem:[#allocation2 + $0x58] sm:$0xff]
          %v516 = vld [vmem:[#allocation2 + $0x60] sm:$0xff]
          %v517 = vld [vmem:[#allocation2 + $0x68] sm:$0xff]
          %v518 = vld [vmem:[#allocation2 + $0x70] sm:$0xff]
          %v519 = vld [vmem:[#allocation2 + $0x78] sm:$0xff]
          %v520 = vld [vmem:[%s216] sm:$0x1]
          %v522 = vlaneseq
          %v523 = vshrl.u32 %v522, 7
          %v524 = vsub.s32 0, %v523
          %v525 = vrot.slane %v520, %v524
          %v527 = vadd.f32 %v504, %v525
          %v528 = vadd.f32 %v505, %v525
          %v529 = vadd.f32 %v506, %v525
          %v530 = vadd.f32 %v507, %v525
          %v531 = vadd.f32 %v508, %v525
          %v532 = vadd.f32 %v509, %v525
          %v533 = vadd.f32 %v510, %v525
          %v534 = vadd.f32 %v511, %v525
          %v535 = vadd.f32 %v512, %v525
          %v536 = vadd.f32 %v513, %v525
          %v537 = vadd.f32 %v514, %v525
          %v538 = vadd.f32 %v515, %v525
          %v539 = vadd.f32 %v516, %v525
          %v540 = vadd.f32 %v517, %v525
          %v541 = vadd.f32 %v518, %v525
          %v542 = vadd.f32 %v519, %v525
          %543 = vst [vmem:[%s204] sm:$0xff] %v527
          %544 = vst [vmem:[%s204 + $0x8] sm:$0xff] %v528
          %545 = vst [vmem:[%s204 + $0x10] sm:$0xff] %v529
          %546 = vst [vmem:[%s204 + $0x18] sm:$0xff] %v530
          %547 = vst [vmem:[%s204 + $0x20] sm:$0xff] %v531
          %548 = vst [vmem:[%s204 + $0x28] sm:$0xff] %v532
          %549 = vst [vmem:[%s204 + $0x30] sm:$0xff] %v533
          %550 = vst [vmem:[%s204 + $0x38] sm:$0xff] %v534
          %551 = vst [vmem:[%s204 + $0x40] sm:$0xff] %v535
          %552 = vst [vmem:[%s204 + $0x48] sm:$0xff] %v536
          %553 = vst [vmem:[%s204 + $0x50] sm:$0xff] %v537
          %554 = vst [vmem:[%s204 + $0x58] sm:$0xff] %v538
          %555 = vst [vmem:[%s204 + $0x60] sm:$0xff] %v539
          %556 = vst [vmem:[%s204 + $0x68] sm:$0xff] %v540
          %557 = vst [vmem:[%s204 + $0x70] sm:$0xff] %v541
          %558 = vst [vmem:[%s204 + $0x78] sm:$0xff] %v542
        $region40: #{tpu_custom_call.1} parent=31 // pred_fallthru
          _
        %s559 = sand.u32 %s121, 1
        %s560 = scalar_lea.sflag [#allocation4], %s559
        %s561 = sand.u32 %s121, 1
        %s562 = smul.addr %s561, 128
        %s563 = scalar_lea.vmem [#allocation3], %s562
        // Predicated region
        $region41: #{tpu_custom_call.1} parent=31 // pred_check
          %p564 = pneg %p131
        $region42: #{tpu_custom_call.1} parent=31 // pred_check_branch
          %566 = sbr.rel (%p564) target = $region44
        $region43: #{tpu_custom_call.1} parent=31 // pred_region
          %s567 = smul.u32 16, %s22
          %s569 = ssub.s32 2048, 2048
          %570 = vsyncadd %s560, %s569
          %s571 = sadd.s32 %s23, %s567
          %s572 = smul.addr %s571, 128
          %s573 = scalar_lea.hbm %s3, %s572
          %s574 = sshll.u32 %s563, 4
          %s575 = int_to_ptr.vmem [resolvable:$true] %s574
          %580 = dma.vmem_to_hbm [thread:$0]  %s575, 2048, %s573, %s560, 128, 128, 8
        $region44: #{tpu_custom_call.1} parent=31 // pred_fallthru
          _
      $region32: #{tpu_custom_call.1} parent=5 // pred_fallthru
        _
      %p581 = scmp.le.s32.totalorder 2, %s12
      // Predicated region
      $region45: #{tpu_custom_call.1} parent=5 // pred_check
        %p582 = pneg %p581
      $region46: #{tpu_custom_call.1} parent=5 // pred_check_branch
        %584 = sbr.rel (%p582) target = $region48
      $region47: #{tpu_custom_call.1} parent=5 // pred_region
        %s585 = ssub.s32 %s12, 2
        // Predicated region
        $region49: #{tpu_custom_call.1} parent=47 // pred_check
          %p586 = pneg %p137
        $region50: #{tpu_custom_call.1} parent=47 // pred_check_branch
          %588 = sbr.rel (%p586) target = $region52
        $region51: #{tpu_custom_call.1} parent=47 // pred_region
          %s589 = sand.u32 %s122, 1
          %s590 = scalar_lea.sflag [#allocation4], %s589
          %s591 = sand.u32 %s122, 1
          %s592 = smul.addr %s591, 128
          %s593 = scalar_lea.vmem [#allocation3], %s592
          %594 = dma.done %s590, 2048
        $region52: #{tpu_custom_call.1} parent=47 // pred_fallthru
          _
      $region48: #{tpu_custom_call.1} parent=5 // pred_fallthru
        _
    $region6: #{tpu_custom_call.1} parent=1 // loop_footer
      %s16 = sadd.s32 1, %s12
    $region7: #{tpu_custom_call.1} parent=1 // loop_footer_branch
      %11 = sbr.rel target = $region3
    $region8: #{tpu_custom_call.1} parent=1 // loop_exit
      _
    %595 = vsyncpa [#allocation4], 1
    %s596 = scalar_lea.sflag [#allocation4], 1
    %597 = vsyncpa %s596, 1

</llo_original>
